<compile_context>
chip_gen: v6e
topology: v6e:2x2x1
jax: 0.10.0
libtpu: 0.0.40
codegen_flags: <defaults>
</compile_context>

<pallas_src>
import functools
import jax
import jax.numpy as jnp
from jax import lax
from jax.experimental import pallas as pl
from jax.experimental.pallas import tpu as pltpu


def _round_up(x, m):
    return ((x + m - 1) // m) * m


def _cdiv(a, b):
    return (a + b - 1) // b


def _vmem_limit_bytes():
    """Generation-aware scoped-VMEM limit (v5e/v6e: 128 MiB phys, v7x: 64 MiB/TC)."""
    phys = 64 << 20                                   # conservative default (v7x)
    try:
        phys = int(getattr(pltpu.get_tpu_info(), "vmem_capacity_bytes", phys))
    except Exception:
        pass
    return min((phys * 3) // 4, 96 << 20)             # 48 MiB on v7x, 96 MiB on v5e/v6e


# ----------------------------- Pallas kernel --------------------------------
def _cvti_kernel(x_ref, w_ref, b_ref, o_ref, *, m, w_row, after):
    """One (batch, row-tile, feature-tile) block.

    x_ref: (L, K_p)      bf16  dw-folded input rows, L = (th+2)*w_row
    w_ref: (3, K_p, TN)  bf16  per-row-tap weights (dw taps folded into K)
    b_ref: (1, TN)       f32   bias tiled over the 4 output phases
    o_ref: (m, TN)       bf16  m = th*w_row output rows of this feature tile
    """
    # Three MXU matmuls, K = K_p (= padded 3*Cin).  Row-tap slice offsets are
    # multiples of w_row (a multiple of 16) -> bf16-sublane aligned, no repack.
    acc = jnp.dot(x_ref[0:m, :], w_ref[0],
                  preferred_element_type=jnp.float32)
    acc = acc + jnp.dot(x_ref[w_row:w_row + m, :], w_ref[1],
                        preferred_element_type=jnp.float32)
    acc = acc + jnp.dot(x_ref[2 * w_row:2 * w_row + m, :], w_ref[2],
                        preferred_element_type=jnp.float32)
    acc = acc + b_ref[...]
    # f32 epilogue on the accumulator.  (For very small Cout the padded lanes
    # also get the transcendental; acceptable — see perf notes.)
    if after == "Tanh":
        acc = jnp.tanh(acc)
    elif after == "sigmoid":
        acc = jax.nn.sigmoid(acc)
    # TODO(synk): after == 'BN' (BatchNorm2d, training-mode batch statistics)
    # needs a cross-tile N*H*W reduction and is not implemented in this kernel.
    o_ref[...] = acc.astype(o_ref.dtype)


# ------------------------------ tile chooser ---------------------------------
def _choose_row_tile(H, w_row, k_p, tn, n_batch, f_tiles, vmem_budget,
                     target_m=2048):
    """Pick the input-row tile th.  Ragged last tile allowed (no th | H)."""
    def vmem_bytes(th):
        L = (th + 2) * w_row
        m = th * w_row
        return (2 * L * k_p * 2            # double-buffered bf16 input block
                + 2 * m * tn * 2           # double-buffered bf16 output block
                + 2 * 3 * k_p * tn * 2     # double-buffered bf16 weight block
                + m * tn * 4               # live f32 accumulator
                + (2 << 20))               # slack for Mosaic internals

    th = max(1, min(H, target_m // max(w_row, 1)))
    while th > 1 and vmem_bytes(th) > vmem_budget:
        th -= 1
    t = _cdiv(H, th)
    th = _cdiv(H, t)                       # rebalance -> fewer junk rows
    # v7x megacore: keep the number of parallel grid steps even so both
    # TensorCores stay busy (only matters when the step count is tiny/odd).
    if (n_batch % 2) and (f_tiles % 2) and (t % 2) and t < H:
        t += 1
        th = _cdiv(H, t)
    return th, t


# ------------------------------- CvTi module ---------------------------------
class CvTi:
    """JAX/Pallas port of models/UNet.py::CvTi (ConvTranspose2d k=4, s=2, p=1)."""

    # Output-row phase a (oh = 2*i + a) -> contributing (kh, dh); same for cols.
    #   a=0: (kh=1, dh=0), (kh=3, dh=-1)      a=1: (kh=0, dh=+1), (kh=2, dh=0)
    _TAPS = {0: ((1, 0), (3, -1)), 1: ((0, 1), (2, 0))}

    def __init__(self, in_channels, out_channels, before=None, after=False,
                 key=jax.random.PRNGKey(0), compute_dtype=jnp.bfloat16,
                 out_dtype=jnp.float32, row_tile=None):
        if after == "BN":
            # TODO(synk): BatchNorm2d (training-mode batch statistics) needs a
            # cross-tile mean/var reduction; fail loudly instead of faking it.
            raise NotImplementedError("CvTi(after='BN') is not supported")
        self.cin = in_channels
        self.cout = out_channels
        self.before = before
        self.after = after
        self.compute_dtype = compute_dtype
        self.out_dtype = out_dtype
        self.row_tile = row_tile           # optional manual override (tests)

        # K (contraction) dim = 3 dw taps x Cin, padded to a bf16 sublane tile.
        self.k_p = _round_up(3 * in_channels, 16)
        # Output features = 4 phases x Cout, padded to full lanes.  Tile NF on
        # a grid axis once it exceeds 1024 lanes so the weight block stays small
        # (resident weight would otherwise blow VMEM at Cin=Cout=512).
        nf_p = _round_up(4 * out_channels, 128)
        if nf_p > 1024:
            nf_p = _round_up(nf_p, 512)
            self.tn = 512
        else:
            self.tn = nf_p
        self.nf_p = nf_p

        # weights_init('gaussian'): weight ~ N(0, 0.02), bias = 0
        # ConvTranspose2d weight shape: (Cin, Cout, kH, kW)
        w0 = 0.02 * jax.random.normal(
            key, (in_channels, out_channels, 4, 4), dtype=jnp.float32)
        self.load(w0, jnp.zeros((out_channels,), dtype=jnp.float32))

    def load(self, weight, bias):
        """(Re)pack parameters: weight (Cin, Cout, 4, 4), bias (Cout,)."""
        self.weight = jnp.asarray(weight, jnp.float32)
        self.bias = jnp.asarray(bias, jnp.float32)
        cin, cout = self.cin, self.cout
        # Phase-decomposed, dw-folded weight: (3 row-taps, 3*Cin_p, NF_p)
        #   w3[dh+1, (dw+1)*Cin + c, (2a+b)*Cout + co] = W[c, co, kh, kw]
        w3 = jnp.zeros((3, self.k_p, self.nf_p), dtype=jnp.float32)
        for a in (0, 1):
            for b in (0, 1):
                p = 2 * a + b
                for kh, dh in self._TAPS[a]:
                    for kw, dw in self._TAPS[b]:
                        w3 = w3.at[dh + 1,
                                   (dw + 1) * cin:(dw + 2) * cin,
                                   p * cout:(p + 1) * cout].set(
                                       self.weight[:, :, kh, kw])
        self.wmat = w3.astype(self.compute_dtype)
        self.bias_row = (jnp.zeros((1, self.nf_p), jnp.float32)
                         .at[0, :4 * cout].set(jnp.tile(self.bias, 4)))

    def __call__(self, x):
        # x: (N, Cin, H, W) float32 (NCHW, matching the PyTorch module)
        N, C, H, W = x.shape
        assert C == self.cin

        # ---- wrapper prep: one fused XLA pass over the (small) input stream.
        xh = jnp.transpose(x, (0, 2, 3, 1))                       # NHWC f32
        if self.before == "ReLU":
            xh = jnp.maximum(xh, 0.0)
        elif self.before == "LReLU":
            xh = jnp.where(xh >= 0, xh, 0.2 * xh)
        xh = xh.astype(self.compute_dtype)

        w_row = _round_up(W, 16)           # bf16 sublane-aligned row stride
        xp = jnp.pad(xh, ((0, 0), (1, 1), (1, 1), (0, 0)))        # spatial halo
        # Fold the three dw (column) taps into channels: K = 3*Cin.
        x3 = jnp.stack([xp[:, :, d:d + W, :] for d in range(3)], axis=3)
        x3 = x3.reshape(N, H + 2, W, 3 * C)
        x3 = jnp.pad(x3, ((0, 0), (0, 0), (0, w_row - W),
                          (0, self.k_p - 3 * C)))

        f_tiles = self.nf_p // self.tn
        vmem_limit = _vmem_limit_bytes()
        if self.row_tile is not None:
            th = max(1, min(H, int(self.row_tile)))
            t = _cdiv(H, th)
        else:
            th, t = _choose_row_tile(H, w_row, self.k_p, self.tn, N, f_tiles,
                                     vmem_budget=vmem_limit)
        h_pad = th * t
        if h_pad > H:                      # ragged last row tile -> zero rows
            x3 = jnp.pad(x3, ((0, 0), (0, h_pad - H), (0, 0), (0, 0)))

        L = (th + 2) * w_row
        m = th * w_row
        assert 2 * w_row + m == L          # dh=2 tap stays in bounds
        if t == 1:
            xf = x3.reshape(N, 1, L, self.k_p)
        else:
            # TODO(synk): replace this halo gather by manual double-buffered
            # DMA from HBM (memory_space=pl.ANY) to drop the extra input pass.
            ridx = jnp.arange(t)[:, None] * th + jnp.arange(th + 2)[None, :]
            xf = x3[:, ridx].reshape(N, t, L, self.k_p)

        kernel = functools.partial(_cvti_kernel, m=m, w_row=w_row,
                                   after=self.after)
        # NOTE: weight/bias index maps ignore (n, tt), so their blocks are only
        # re-fetched when the innermost NF axis changes; their 2x (default)
        # buffering is accounted for in the VMEM budget above.
        out = pl.pallas_call(
            kernel,
            out_shape=jax.ShapeDtypeStruct((N, t, m, self.nf_p),
                                           self.compute_dtype),
            grid_spec=pltpu.PrefetchScalarGridSpec(
                num_scalar_prefetch=0,
                grid=(N, t, f_tiles),      # NF innermost: input block is reused
                in_specs=[
                    pl.BlockSpec((None, None, L, self.k_p),
                                 lambda n, tt, f: (n, tt, 0, 0)),
                    pl.BlockSpec((3, self.k_p, self.tn),
                                 lambda n, tt, f: (0, 0, f)),
                    pl.BlockSpec((1, self.tn),
                                 lambda n, tt, f: (0, f)),
                ],
                out_specs=pl.BlockSpec((None, None, m, self.tn),
                                       lambda n, tt, f: (n, tt, 0, f)),
            ),
            compiler_params=pltpu.CompilerParams(
                dimension_semantics=("parallel", "parallel", "parallel"),
                vmem_limit_bytes=int(vmem_limit),
            ),
        )(xf, self.wmat, self.bias_row)

        # ---- reassemble the 2x2 output phases into NCHW (bf16 pass).
        # TODO(synk): for fused decoders keep this channels-last / phase-major
        # and fold the transpose into the consumer to save this HBM pass.
        nf = 4 * self.cout
        y = out.reshape(N, t * th, w_row, self.nf_p)[:, :H, :W, :nf]
        y = y.reshape(N, H, W, 2, 2, self.cout)        # (n, i, j, a, b, co)
        y = y.transpose(0, 5, 1, 3, 2, 4).reshape(N, self.cout, 2 * H, 2 * W)
        return y.astype(self.out_dtype)


# ------------------------------- reference -----------------------------------
def _reference(x, weight, bias, before, after):
    if before == "ReLU":
        x = jnp.maximum(x, 0.0)
    elif before == "LReLU":
        x = jnp.where(x >= 0, x, 0.2 * x)
    # ConvTranspose2d(k=4, s=2, p=1) == conv_general_dilated with lhs_dilation
    w_lax = jnp.flip(weight, axis=(2, 3)).transpose(1, 0, 2, 3)   # (Cout,Cin,4,4)
    y = lax.conv_general_dilated(
        x, w_lax, window_strides=(1, 1), padding=((2, 2), (2, 2)),
        lhs_dilation=(2, 2), rhs_dilation=(1, 1),
        dimension_numbers=("NCHW", "OIHW", "NCHW"))
    y = y + bias[None, :, None, None]
    if after == "Tanh":
        y = jnp.tanh(y)
    elif after == "sigmoid":
        y = jax.nn.sigmoid(y)
    return y


# ---------------------------------- main --------------------------------------
if __name__ == "__main__":
    key = jax.random.PRNGKey(0)
    kx, kw1, kw2, kw3, kb = jax.random.split(key, 5)

    N, Cin, Cout, H, W = 2, 4, 8, 16, 16
    x = jax.random.normal(kx, (N, Cin, H, W), dtype=jnp.float32)

    # 1) Plain transposed conv + bias.  Use a non-zero bias to exercise the
    #    4-phase bias packing (review correctness concern).
    mod0 = CvTi(Cin, Cout, before=None, after=False, key=kw1)
    mod0.load(mod0.weight, 0.1 * jax.random.normal(kb, (Cout,), jnp.float32))
    y0 = jax.block_until_ready(mod0(x))
    r0 = _reference(x, mod0.weight, mod0.bias, None, False)
    assert y0.shape == (N, Cout, 2 * H, 2 * W)
    assert jnp.allclose(y0, r0, atol=2e-2, rtol=2e-2), \
        float(jnp.max(jnp.abs(y0 - r0)))

    # 2) Decoder-style config: before='LReLU', after='Tanh'.
    mod1 = CvTi(Cin, Cout, before="LReLU", after="Tanh", key=kw2)
    y1 = jax.block_until_ready(mod1(x))
    r1 = _reference(x, mod1.weight, mod1.bias, "LReLU", "Tanh")
    assert jnp.allclose(y1, r1, atol=2e-2, rtol=2e-2), \
        float(jnp.max(jnp.abs(y1 - r1)))

    # 3) Ragged-H / multi-row-tile path (th does not divide H), ReLU + sigmoid.
    mod2 = CvTi(Cin, Cout, before="ReLU", after="sigmoid", key=kw3, row_tile=3)
    x2 = jax.random.normal(kx, (1, Cin, 10, W), dtype=jnp.float32)
    y2 = jax.block_until_ready(mod2(x2))
    r2 = _reference(x2, mod2.weight, mod2.bias, "ReLU", "sigmoid")
    assert y2.shape == (1, Cout, 20, 2 * W)
    assert jnp.allclose(y2, r2, atol=2e-2, rtol=2e-2), \
        float(jnp.max(jnp.abs(y2 - r2)))

    print("KERNEL_OK")
</pallas_src>

<mosaic_0001>
module attributes {stable_mosaic.version = 11 : i64} {
  func.func @_cvti_kernel(%arg0: i32, %arg1: i32, %arg2: i32, %arg3: memref<1x1x288x16xbf16, #tpu.memory_space<vmem>>, %arg4: memref<3x16x128xbf16, #tpu.memory_space<vmem>>, %arg5: memref<1x128xf32, #tpu.memory_space<vmem>>, %arg6: memref<1x1x256x128xbf16, #tpu.memory_space<vmem>>) attributes {dimension_semantics = [#tpu.dimension_semantics<parallel>, #tpu.dimension_semantics<parallel>, #tpu.dimension_semantics<parallel>], iteration_bounds = array<i64: 2, 1, 1>, scalar_prefetch = 0 : i64, scratch_operands = 0 : i64, tpu.core_type = #tpu.core_type<tc>, window_params = [{transform_indices = @transform_0, window_bounds = array<i64: 1, 1, 288, 16>}, {transform_indices = @transform_1, window_bounds = array<i64: 3, 16, 128>}, {transform_indices = @transform_2, window_bounds = array<i64: 1, 128>}, {transform_indices = @transform_3, window_bounds = array<i64: 1, 1, 256, 128>}]} {
    %c0 = arith.constant 0 : index
    %c0_0 = arith.constant 0 : index
    %c0_1 = arith.constant 0 : index
    %c0_2 = arith.constant 0 : index
    %0 = vector.load %arg3[%c0, %c0_0, %c0_1, %c0_2] : memref<1x1x288x16xbf16, #tpu.memory_space<vmem>>, vector<1x1x256x16xbf16>
    %1 = vector.shape_cast %0 : vector<1x1x256x16xbf16> to vector<256x16xbf16>
    %c0_3 = arith.constant 0 : index
    %c0_4 = arith.constant 0 : index
    %c0_5 = arith.constant 0 : index
    %2 = vector.load %arg4[%c0_3, %c0_4, %c0_5] : memref<3x16x128xbf16, #tpu.memory_space<vmem>>, vector<1x16x128xbf16>
    %3 = vector.shape_cast %2 : vector<1x16x128xbf16> to vector<16x128xbf16>
    %cst = arith.constant dense<0.000000e+00> : vector<256x128xf32>
    %4 = tpu.matmul %1, %3, %cst {dimension_numbers = #tpu.dot_dimension_numbers<[1], [0], [0], [1], [0, 0, 1, 1], [], []>} : vector<256x16xbf16>, vector<16x128xbf16>, vector<256x128xf32> -> vector<256x128xf32>
    %c0_6 = arith.constant 0 : index
    %c0_7 = arith.constant 0 : index
    %c16 = arith.constant 16 : index
    %c0_8 = arith.constant 0 : index
    %5 = vector.load %arg3[%c0_6, %c0_7, %c16, %c0_8] : memref<1x1x288x16xbf16, #tpu.memory_space<vmem>>, vector<1x1x256x16xbf16>
    %6 = vector.shape_cast %5 : vector<1x1x256x16xbf16> to vector<256x16xbf16>
    %c1 = arith.constant 1 : index
    %c0_9 = arith.constant 0 : index
    %c0_10 = arith.constant 0 : index
    %7 = vector.load %arg4[%c1, %c0_9, %c0_10] : memref<3x16x128xbf16, #tpu.memory_space<vmem>>, vector<1x16x128xbf16>
    %8 = vector.shape_cast %7 : vector<1x16x128xbf16> to vector<16x128xbf16>
    %cst_11 = arith.constant dense<0.000000e+00> : vector<256x128xf32>
    %9 = tpu.matmul %6, %8, %cst_11 {dimension_numbers = #tpu.dot_dimension_numbers<[1], [0], [0], [1], [0, 0, 1, 1], [], []>} : vector<256x16xbf16>, vector<16x128xbf16>, vector<256x128xf32> -> vector<256x128xf32>
    %10 = arith.addf %4, %9 : vector<256x128xf32>
    %c0_12 = arith.constant 0 : index
    %c0_13 = arith.constant 0 : index
    %c32 = arith.constant 32 : index
    %c0_14 = arith.constant 0 : index
    %11 = vector.load %arg3[%c0_12, %c0_13, %c32, %c0_14] : memref<1x1x288x16xbf16, #tpu.memory_space<vmem>>, vector<1x1x256x16xbf16>
    %12 = vector.shape_cast %11 : vector<1x1x256x16xbf16> to vector<256x16xbf16>
    %c2 = arith.constant 2 : index
    %c0_15 = arith.constant 0 : index
    %c0_16 = arith.constant 0 : index
    %13 = vector.load %arg4[%c2, %c0_15, %c0_16] : memref<3x16x128xbf16, #tpu.memory_space<vmem>>, vector<1x16x128xbf16>
    %14 = vector.shape_cast %13 : vector<1x16x128xbf16> to vector<16x128xbf16>
    %cst_17 = arith.constant dense<0.000000e+00> : vector<256x128xf32>
    %15 = tpu.matmul %12, %14, %cst_17 {dimension_numbers = #tpu.dot_dimension_numbers<[1], [0], [0], [1], [0, 0, 1, 1], [], []>} : vector<256x16xbf16>, vector<16x128xbf16>, vector<256x128xf32> -> vector<256x128xf32>
    %16 = arith.addf %10, %15 : vector<256x128xf32>
    %c0_18 = arith.constant 0 : index
    %c0_19 = arith.constant 0 : index
    %17 = vector.load %arg5[%c0_18, %c0_19] : memref<1x128xf32, #tpu.memory_space<vmem>>, vector<1x128xf32>
    %18 = vector.broadcast %17 : vector<1x128xf32> to vector<256x128xf32>
    %19 = arith.addf %16, %18 : vector<256x128xf32>
    %20 = arith.truncf %19 : vector<256x128xf32> to vector<256x128xbf16>
    %c0_20 = arith.constant 0 : index
    %c0_21 = arith.constant 0 : index
    %c0_22 = arith.constant 0 : index
    %c0_23 = arith.constant 0 : index
    %21 = vector.load %arg6[%c0_20, %c0_21, %c0_22, %c0_23] : memref<1x1x256x128xbf16, #tpu.memory_space<vmem>>, vector<1x1x256x128xbf16>
    %22 = vector.shape_cast %21 : vector<1x1x256x128xbf16> to vector<256x128xbf16>
    %23 = vector.shape_cast %20 : vector<256x128xbf16> to vector<1x1x256x128xbf16>
    tpu.vector_store %arg6[%c0_20, %c0_21, %c0_22, %c0_23], %23 {strides = array<i32>} : memref<1x1x256x128xbf16, #tpu.memory_space<vmem>>, vector<1x1x256x128xbf16>,
    return
  }
  func.func @transform_0(%arg0: i32, %arg1: i32, %arg2: i32) -> (i32, i32, i32, i32) {
    %c0_i32 = arith.constant 0 : i32
    %c0_i32_0 = arith.constant 0 : i32
    %c0_i32_1 = arith.constant 0 : i32
    return %arg0, %arg1, %c0_i32, %c0_i32_0 : i32, i32, i32, i32
  }
  func.func @transform_1(%arg0: i32, %arg1: i32, %arg2: i32) -> (i32, i32, i32) {
    %c0_i32 = arith.constant 0 : i32
    %c0_i32_0 = arith.constant 0 : i32
    %c0_i32_1 = arith.constant 0 : i32
    return %c0_i32, %c0_i32_0, %arg2 : i32, i32, i32
  }
  func.func @transform_2(%arg0: i32, %arg1: i32, %arg2: i32) -> (i32, i32) {
    %c0_i32 = arith.constant 0 : i32
    %c0_i32_0 = arith.constant 0 : i32
    return %c0_i32, %arg2 : i32, i32
  }
  func.func @transform_3(%arg0: i32, %arg1: i32, %arg2: i32) -> (i32, i32, i32, i32) {
    %c0_i32 = arith.constant 0 : i32
    %c0_i32_0 = arith.constant 0 : i32
    return %arg0, %arg1, %c0_i32, %arg2 : i32, i32, i32, i32
  }
}

</mosaic_0001>

<llo_original>
// kernel: tpu_custom_call.1
$region0: #{tpu_custom_call.1}
  #allocation0 [shape = 'u32[]', space=smem, size = 0x4, offset = 0x4, fixed_abs, tag = 'smem constant byte address 0x4 - core index']
  #allocation1 [shape = 'u32[144,128]{1,0:T(1,128)}', space=vmem, size = 0x12000, scoped, tag = 'internal scratch']
  %s0 = inlined_call_operand.vmem [shape: bf16[2,1,288,16], index: 0, kind: input, shape index: {}]
  %s1 = inlined_call_operand.vmem [shape: bf16[3,16,128], index: 1, kind: input, shape index: {}]
  %s2 = inlined_call_operand.vmem [shape: f32[1,128], index: 2, kind: input, shape index: {}]
  %s3 = inlined_call_operand.hbm [shape: bf16[2,1,256,128], index: 3, kind: output, shape index: {}]
  %s4 = sld [smem:[#allocation0]]
  $region45: #{tpu_custom_call.1} parent=0
    _
  %s6 = ssub.s32 1, %s4
  %s7 = scalar_select 0, %s6, %s4
  $region1: #{tpu_custom_call.1} parent=0
    #allocation2 [shape = 'u8[131072]{0}', space=vmem, size = 0x20000, scoped, tag = 'output window, operand 0']
    #allocation3 [shape = 's32[2]{0}', space=sflag, size = 0x8, scoped, tag = 'scoped memory for tpu_custom_call.1']
    %8 = vsyncpa [#allocation3], 0
    %s9 = scalar_lea.sflag [#allocation3], 1
    %10 = vsyncpa %s9, 0
    loop: start=0, step=1, limit=4
    $region2: #{tpu_custom_call.1} parent=1 // loop_pre_header
      _
    $region3: #{tpu_custom_call.1} parent=1 // loop_header
      %s12 = sphi 0, %s16
      %p13 = scmp.ge.s32.totalorder %s12, 4
      %s19 = sphi 0, %s38
      %s20 = sphi 0, %s34
      %s21 = sphi 0, %s30
      %s22 = sphi 0, %s19
      %s23 = sphi 0, %s20
      %s24 = sphi 0, %s21
      %s25 = sphi 0, %s22
      %s26 = sphi 0, %s23
      %s27 = sphi 0, %s24
      %s43 = sphi 0, %s45
      %s46 = sphi 0, %s43
      %s47 = sphi 0, %s46
      %s63 = sphi 0, %s47
      %s69 = sphi 0, %s71
      %s72 = sphi 0, %s69
      %s73 = sphi 0, %s72
      %s89 = sphi 0, %s73
      %s95 = sphi 0, %s97
      %s98 = sphi 0, %s95
      %s99 = sphi 0, %s98
      %s115 = sphi 0, %s99
      %s125 = sphi 0, %s127
      %s128 = sphi 0, %s125
      %s129 = sphi 0, %s128
      %s145 = sphi 0, %s129
    $region4: #{tpu_custom_call.1} parent=1 // loop_header_branch
      %15 = sbr.rel (%p13) target = $region8
    $region5: #{tpu_custom_call.1} parent=1 // loop_body
      %s17 = ssub.s32 %s12, 1
      %s18 = ssub.s32 %s12, 2
      %s28 = sadd.s32 1, %s21
      %p29 = scmp.ge.s32.totalorder %s28, 1
      %s30 = scalar_select %p29, 0, %s28
      %s31 = sadd.s32 1, %s20
      %s32 = scalar_select %p29, %s31, %s20
      %p33 = scmp.ge.s32.totalorder %s32, 1
      %s34 = scalar_select %p33, 0, %s32
      %s35 = sadd.s32 1, %s19
      %s36 = scalar_select %p33, %s35, %s19
      %p37 = scmp.ge.s32.totalorder %s36, 2
      %s38 = scalar_select %p37, 0, %s36
      %s39 = ssub.s32 %s19, %s38
      %s40 = ssub.s32 %s20, %s34
      %s41 = sor.u32 %s39, %s40
      %p42 = scmp.eq.s32.totalorder %s41, 0
      %s44 = sadd.s32 %s43, 1
      %s45 = scalar_select %p42, %s43, %s44
      %p48 = pneg %p42
      %p49 = scmp.eq.s32.totalorder %s12, 1
      %p50 = por %p48, %p49
      %p51 = scmp.ne.s32.totalorder %s43, %s46
      %p52 = scmp.eq.s32.totalorder %s12, 0
      %p53 = por %p51, %p52
      %p54 = scmp.ne.s32.totalorder %s43, %s46
      %p55 = scmp.eq.s32.totalorder %s17, 1
      %p56 = por %p54, %p55
      %p57 = scmp.ne.s32.totalorder %s46, %s47
      %p58 = scmp.eq.s32.totalorder %s17, 0
      %p59 = por %p57, %p58
      %p60 = scmp.ne.s32.totalorder %s46, %s47
      %p61 = scmp.eq.s32.totalorder %s18, 1
      %p62 = por %p60, %p61
      %p64 = scmp.ne.s32.totalorder %s47, %s63
      %p65 = scmp.eq.s32.totalorder %s18, 0
      %p66 = por %p64, %p65
      %s67 = ssub.s32 %s21, %s30
      %p68 = scmp.eq.s32.totalorder %s67, 0
      %s70 = sadd.s32 %s69, 1
      %s71 = scalar_select %p68, %s69, %s70
      %p74 = pneg %p68
      %p75 = scmp.eq.s32.totalorder %s12, 1
      %p76 = por %p74, %p75
      %p77 = scmp.ne.s32.totalorder %s69, %s72
      %p78 = scmp.eq.s32.totalorder %s12, 0
      %p79 = por %p77, %p78
      %p80 = scmp.ne.s32.totalorder %s69, %s72
      %p81 = scmp.eq.s32.totalorder %s17, 1
      %p82 = por %p80, %p81
      %p83 = scmp.ne.s32.totalorder %s72, %s73
      %p84 = scmp.eq.s32.totalorder %s17, 0
      %p85 = por %p83, %p84
      %p86 = scmp.ne.s32.totalorder %s72, %s73
      %p87 = scmp.eq.s32.totalorder %s18, 1
      %p88 = por %p86, %p87
      %p90 = scmp.ne.s32.totalorder %s73, %s89
      %p91 = scmp.eq.s32.totalorder %s18, 0
      %p92 = por %p90, %p91
      %s93 = ssub.s32 %s21, %s30
      %p94 = scmp.eq.s32.totalorder %s93, 0
      %s96 = sadd.s32 %s95, 1
      %s97 = scalar_select %p94, %s95, %s96
      %p100 = pneg %p94
      %p101 = scmp.eq.s32.totalorder %s12, 1
      %p102 = por %p100, %p101
      %p103 = scmp.ne.s32.totalorder %s95, %s98
      %p104 = scmp.eq.s32.totalorder %s12, 0
      %p105 = por %p103, %p104
      %p106 = scmp.ne.s32.totalorder %s95, %s98
      %p107 = scmp.eq.s32.totalorder %s17, 1
      %p108 = por %p106, %p107
      %p109 = scmp.ne.s32.totalorder %s98, %s99
      %p110 = scmp.eq.s32.totalorder %s17, 0
      %p111 = por %p109, %p110
      %p112 = scmp.ne.s32.totalorder %s98, %s99
      %p113 = scmp.eq.s32.totalorder %s18, 1
      %p114 = por %p112, %p113
      %p116 = scmp.ne.s32.totalorder %s99, %s115
      %p117 = scmp.eq.s32.totalorder %s18, 0
      %p118 = por %p116, %p117
      %s119 = ssub.s32 %s19, %s38
      %s120 = ssub.s32 %s20, %s34
      %s121 = sor.u32 %s119, %s120
      %s122 = ssub.s32 %s21, %s30
      %s123 = sor.u32 %s121, %s122
      %p124 = scmp.eq.s32.totalorder %s123, 0
      %s126 = sadd.s32 %s125, 1
      %s127 = scalar_select %p124, %s125, %s126
      %p130 = pneg %p124
      %p131 = scmp.eq.s32.totalorder %s12, 1
      %p132 = por %p130, %p131
      %p133 = scmp.ne.s32.totalorder %s125, %s128
      %p134 = scmp.eq.s32.totalorder %s12, 0
      %p135 = por %p133, %p134
      %p136 = scmp.ne.s32.totalorder %s125, %s128
      %p137 = scmp.eq.s32.totalorder %s17, 1
      %p138 = por %p136, %p137
      %p139 = scmp.ne.s32.totalorder %s128, %s129
      %p140 = scmp.eq.s32.totalorder %s17, 0
      %p141 = por %p139, %p140
      %p142 = scmp.ne.s32.totalorder %s128, %s129
      %p143 = scmp.eq.s32.totalorder %s18, 1
      %p144 = por %p142, %p143
      %p146 = scmp.ne.s32.totalorder %s129, %s145
      %p147 = scmp.eq.s32.totalorder %s18, 0
      %p148 = por %p146, %p147
      %p149 = scmp.le.s32.totalorder 1, %s12
      %p150 = scmp.lt.s32.totalorder %s12, 3
      %p151 = pnand %p149, %p150
      %p152 = pneg %p151
      // Predicated region
      $region9: #{tpu_custom_call.1} parent=5 // pred_check
        _
      $region10: #{tpu_custom_call.1} parent=5 // pred_check_branch
        %154 = sbr.rel (%p151) target = $region12
      $region11: #{tpu_custom_call.1} parent=5 // pred_region
        %s155 = ssub.s32 %s12, 1
        // Predicated region
        $region13: #{tpu_custom_call.1} parent=11 // pred_check
          %p156 = pneg %p85
        $region14: #{tpu_custom_call.1} parent=11 // pred_check_branch
          %158 = sbr.rel (%p156) target = $region16
        $region15: #{tpu_custom_call.1} parent=11 // pred_region
          %p159 = scmp.lt.s32.totalorder %s24, 0
          %s160 = scalar_select %p159, %s24, 0
          %s161 = smul.addr %s160, 4
          %s162 = scalar_lea.vmem %s1, %s161
        $region16: #{tpu_custom_call.1} parent=11 // pred_fallthru
          _
        // Predicated region
        $region17: #{tpu_custom_call.1} parent=11 // pred_check
          %p163 = pneg %p111
        $region18: #{tpu_custom_call.1} parent=11 // pred_check_branch
          %165 = sbr.rel (%p163) target = $region20
        $region19: #{tpu_custom_call.1} parent=11 // pred_region
          %p166 = scmp.lt.s32.totalorder %s24, 0
          %s167 = scalar_select %p166, %s24, 0
          %s168 = scalar_lea.vmem %s2, %s167
        $region20: #{tpu_custom_call.1} parent=11 // pred_fallthru
          _
      $region12: #{tpu_custom_call.1} parent=5 // pred_fallthru
        _
      %p169 = scmp.lt.s32.totalorder %s12, 2
      // Predicated region
      $region21: #{tpu_custom_call.1} parent=5 // pred_check
        %p170 = pneg %p169
      $region22: #{tpu_custom_call.1} parent=5 // pred_check_branch
        %172 = sbr.rel (%p170) target = $region24
      $region23: #{tpu_custom_call.1} parent=5 // pred_region
        // Predicated region
        $region25: #{tpu_custom_call.1} parent=23 // pred_check
          %p173 = pneg %p53
        $region26: #{tpu_custom_call.1} parent=23 // pred_check_branch
          %175 = sbr.rel (%p173) target = $region28
        $region27: #{tpu_custom_call.1} parent=23 // pred_region
          %p176 = scmp.lt.s32.totalorder %s19, 1
          %s177 = scalar_select %p176, %s19, 1
          %p178 = scmp.lt.s32.totalorder %s20, 0
          %s179 = scalar_select %p178, %s20, 0
          %s180 = smul.addr %s179, 36
          %s181 = smul.addr %s177, 36
          %s182 = sadd.s32 %s180, %s181
          %s183 = smul.addr %s182, 4
          %s184 = scalar_lea.vmem %s0, %s183
        $region28: #{tpu_custom_call.1} parent=23 // pred_fallthru
          _
      $region24: #{tpu_custom_call.1} parent=5 // pred_fallthru
        _
      %p185 = scmp.le.s32.totalorder 1, %s12
      %p186 = scmp.lt.s32.totalorder %s12, 3
      %p187 = pnand %p185, %p186
      %p188 = pneg %p187
      // Predicated region
      $region29: #{tpu_custom_call.1} parent=5 // pred_check
        _
      $region30: #{tpu_custom_call.1} parent=5 // pred_check_branch
        %190 = sbr.rel (%p187) target = $region32
      $region31: #{tpu_custom_call.1} parent=5 // pred_region
        %s191 = ssub.s32 %s12, 1
        %p192 = scmp.lt.s32.totalorder %s22, 1
        %s193 = scalar_select %p192, %s22, 1
        %p194 = scmp.lt.s32.totalorder %s23, 0
        %s195 = scalar_select %p194, %s23, 0
        %s196 = smul.addr %s195, 36
        %s197 = smul.addr %s193, 36
        %s198 = sadd.s32 %s196, %s197
        %s199 = smul.addr %s198, 4
        %s200 = scalar_lea.vmem %s0, %s199
        %p201 = pneg %p59
        %p202 = pneg %p56
        %p203 = scmp.lt.s32.totalorder %s24, 0
        %s204 = scalar_select %p203, %s24, 0
        %s205 = smul.addr %s204, 4
        %s206 = scalar_lea.vmem %s1, %s205
        %p207 = pneg %p85
        %p208 = pneg %p82
        %p209 = scmp.lt.s32.totalorder %s24, 0
        %s210 = scalar_select %p209, %s24, 0
        %s211 = scalar_lea.vmem %s2, %s210
        %p212 = pneg %p111
        %p213 = pneg %p108
        %p214 = pneg %p141
        %p215 = pneg %p138
        %s216 = sand.u32 %s128, 1
        %s217 = scalar_lea.sflag [#allocation3], %s216
        %s218 = sand.u32 %s128, 1
        %s219 = smul.addr %s218, 128
        %s220 = scalar_lea.vmem [#allocation2], %s219
        %p221 = scmp.lt.s32.totalorder %s22, 1
        %s222 = scalar_select %p221, %s22, 1
        %p223 = scmp.lt.s32.totalorder %s23, 0
        %s224 = scalar_select %p223, %s23, 0
        %s225 = smul.addr %s224, 36
        %s226 = smul.addr %s222, 36
        %s227 = sadd.s32 %s225, %s226
        %s228 = smul.addr %s227, 4
        %s229 = scalar_lea.vmem %s0, %s228
        %p230 = scmp.lt.s32.totalorder %s24, 0
        %s231 = scalar_select %p230, %s24, 0
        %s232 = smul.addr %s231, 4
        %s233 = scalar_lea.vmem %s1, %s232
        %p234 = scmp.lt.s32.totalorder %s24, 0
        %s235 = scalar_select %p234, %s24, 0
        %s236 = scalar_lea.vmem %s2, %s235
        %v238 = vld [vmem:[%s229] sm:$0xf]
        %v239 = vld [vmem:[%s229 + $0x4] sm:$0xf]
        %v240 = vld [vmem:[%s229 + $0x8] sm:$0xf]
        %v241 = vld [vmem:[%s229 + $0xc] sm:$0xf]
        %v242 = vld [vmem:[%s229 + $0x10] sm:$0xf]
        %v243 = vld [vmem:[%s229 + $0x14] sm:$0xf]
        %v244 = vld [vmem:[%s229 + $0x18] sm:$0xf]
        %v245 = vld [vmem:[%s229 + $0x1c] sm:$0xf]
        %v246 = vld [vmem:[%s229 + $0x20] sm:$0xf]
        %v247 = vld [vmem:[%s229 + $0x24] sm:$0xf]
        %v248 = vld [vmem:[%s229 + $0x28] sm:$0xf]
        %v249 = vld [vmem:[%s229 + $0x2c] sm:$0xf]
        %v250 = vld [vmem:[%s229 + $0x30] sm:$0xf]
        %v251 = vld [vmem:[%s229 + $0x34] sm:$0xf]
        %v252 = vld [vmem:[%s229 + $0x38] sm:$0xf]
        %v253 = vld [vmem:[%s229 + $0x3c] sm:$0xf]
        %v254 = vld [vmem:[%s229 + $0x40] sm:$0xf]
        %v255 = vld [vmem:[%s229 + $0x44] sm:$0xf]
        %v256 = vld [vmem:[%s229 + $0x48] sm:$0xf]
        %v257 = vld [vmem:[%s229 + $0x4c] sm:$0xf]
        %v258 = vld [vmem:[%s229 + $0x50] sm:$0xf]
        %v259 = vld [vmem:[%s229 + $0x54] sm:$0xf]
        %v260 = vld [vmem:[%s229 + $0x58] sm:$0xf]
        %v261 = vld [vmem:[%s229 + $0x5c] sm:$0xf]
        %v262 = vld [vmem:[%s229 + $0x60] sm:$0xf]
        %v263 = vld [vmem:[%s229 + $0x64] sm:$0xf]
        %v264 = vld [vmem:[%s229 + $0x68] sm:$0xf]
        %v265 = vld [vmem:[%s229 + $0x6c] sm:$0xf]
        %v266 = vld [vmem:[%s229 + $0x70] sm:$0xf]
        %v267 = vld [vmem:[%s229 + $0x74] sm:$0xf]
        %v268 = vld [vmem:[%s229 + $0x78] sm:$0xf]
        %v269 = vld [vmem:[%s229 + $0x7c] sm:$0xf]
        %v270 = vld [vmem:[%s233] sm:$0xf]
        %v271 = vld [vmem:[%s233 + $0x4] sm:$0xf]
        %v272 = vld [vmem:[%s229 + $0x80] sm:$0xf]
        %v273 = vld [vmem:[%s229 + $0x84] sm:$0xf]
        %s274 = scalar_lea.vmem %s233, 8
        %v275 = vld [vmem:[%s274] sm:$0xf]
        %v276 = vld [vmem:[%s274 + $0x4] sm:$0xf]
        %v309 = vunpack.c.l.b16 %v240
        %v310 = vunpack.c.l.b16 %v241
        %v311 = vunpack.c.l.b16 %v242
        %v312 = vunpack.c.l.b16 %v243
        %v313 = vunpack.c.l.b16 %v244
        %v314 = vunpack.c.l.b16 %v245
        %v315 = vunpack.c.l.b16 %v246
        %v316 = vunpack.c.l.b16 %v247
        %v317 = vunpack.c.l.b16 %v248
        %v318 = vunpack.c.l.b16 %v249
        %v319 = vunpack.c.l.b16 %v250
        %v320 = vunpack.c.l.b16 %v251
        %v321 = vunpack.c.l.b16 %v252
        %v322 = vunpack.c.l.b16 %v253
        %v323 = vunpack.c.l.b16 %v254
        %v324 = vunpack.c.l.b16 %v255
        %v325 = vunpack.c.l.b16 %v256
        %v326 = vunpack.c.l.b16 %v257
        %v327 = vunpack.c.l.b16 %v258
        %v328 = vunpack.c.l.b16 %v259
        %v329 = vunpack.c.l.b16 %v260
        %v330 = vunpack.c.l.b16 %v261
        %v331 = vunpack.c.l.b16 %v262
        %v332 = vunpack.c.l.b16 %v263
        %v333 = vunpack.c.l.b16 %v264
        %v334 = vunpack.c.l.b16 %v265
        %v335 = vunpack.c.l.b16 %v266
        %v336 = vunpack.c.l.b16 %v267
        %v337 = vunpack.c.l.b16 %v268
        %v338 = vunpack.c.l.b16 %v269
        %v339 = vunpack.c.l.b16 %v272
        %v340 = vunpack.c.l.b16 %v273
        %v341 = vpack.c.b16 %v310, %v309
        %v342 = vpack.c.b16 %v312, %v311
        %v343 = vpack.c.b16 %v314, %v313
        %v344 = vpack.c.b16 %v316, %v315
        %v345 = vpack.c.b16 %v318, %v317
        %v346 = vpack.c.b16 %v320, %v319
        %v347 = vpack.c.b16 %v322, %v321
        %v348 = vpack.c.b16 %v324, %v323
        %v349 = vpack.c.b16 %v326, %v325
        %v350 = vpack.c.b16 %v328, %v327
        %v351 = vpack.c.b16 %v330, %v329
        %v352 = vpack.c.b16 %v332, %v331
        %v353 = vpack.c.b16 %v334, %v333
        %v354 = vpack.c.b16 %v336, %v335
        %v355 = vpack.c.b16 %v338, %v337
        %v356 = vpack.c.b16 %v340, %v339
        %v359 = vunpack.c.l.b16 %v275
        %v360 = vunpack.c.l.b16 %v276
        %v361 = vpack.c.b16 %v360, %v359
        %vm363 = vcmask 130048
        %v365 = vsel %vm363, %v341, 0
        %v368 = vsel %vm363, %v342, 0
        %v371 = vsel %vm363, %v343, 0
        %v374 = vsel %vm363, %v344, 0
        %v377 = vsel %vm363, %v345, 0
        %v380 = vsel %vm363, %v346, 0
        %v383 = vsel %vm363, %v347, 0
        %v386 = vsel %vm363, %v348, 0
        %v389 = vsel %vm363, %v349, 0
        %v392 = vsel %vm363, %v350, 0
        %v395 = vsel %vm363, %v351, 0
        %v398 = vsel %vm363, %v352, 0
        %v401 = vsel %vm363, %v353, 0
        %v404 = vsel %vm363, %v354, 0
        %v407 = vsel %vm363, %v355, 0
        %v410 = vsel %vm363, %v356, 0
        %412 = vmatprep.subr.bf16.mxu0 0
        %413 = vmatpush1.bf16.msra.mxu0 0
        %414 = vmatprep.subr.bf16.mxu0 0
        %415 = vmatpush1.bf16.msra.mxu0 0
        %416 = vmatprep.subr.bf16.mxu0 0
        %417 = vmatpush1.bf16.msra.mxu0 0
        %418 = vmatprep.subr.bf16.mxu0 0
        %419 = vmatpush1.bf16.msra.mxu0 0
        %420 = vmatprep.subr.bf16.mxu0 0
        %421 = vmatpush1.bf16.msra.mxu0 0
        %422 = vmatprep.subr.bf16.mxu0 0
        %423 = vmatpush1.bf16.msra.mxu0 0
        %424 = vmatprep.subr.bf16.mxu0 0
        %425 = vmatpush1.bf16.msra.mxu0 0
        %426 = vmatprep.subr.bf16.mxu0 0
        %427 = vmatpush1.bf16.msra.mxu0 %v361
        %428 = vmatprep.subr.bf16.mxu0 0
        %429 = vmatpush2.bf16.msra.mxu0 0
        %430 = vmatprep.subr.bf16.mxu0 0
        %431 = vmatpush2.bf16.msra.mxu0 0
        %432 = vmatprep.subr.bf16.mxu0 0
        %433 = vmatpush2.bf16.msra.mxu0 0
        %434 = vmatprep.subr.bf16.mxu0 0
        %435 = vmatpush2.bf16.msra.mxu0 0
        %436 = vmatprep.subr.bf16.mxu0 0
        %437 = vmatpush2.bf16.msra.mxu0 0
        %438 = vmatprep.subr.bf16.mxu0 0
        %439 = vmatpush2.bf16.msra.mxu0 0
        %440 = vmatprep.subr.bf16.mxu0 0
        %441 = vmatpush2.bf16.msra.mxu0 0
        %442 = vmatprep.subr.bf16.mxu0 0
        %443 = vmatpush2.bf16.msra.mxu0 0
        %444 = vmatprep.mubr.bf16.mxu0 0
        %445 = vmatmul.mubr.bf16.gmra.mxu0 %v365
        %v446 = vpop.f32.mrf.mxu0
        %v447 = vadd.f32 0.0, %v446
        %v448 = vpop.f32.mrf.mxu0
        %v449 = vpop.f32.mrf.mxu0
        %v450 = vadd.f32 0.0, %v449
        %v451 = vpop.f32.mrf.mxu0
        %452 = vmatprep.mubr.bf16.mxu0 0
        %453 = vmatmul.mubr.bf16.gmra.mxu0 %v368
        %v454 = vpop.f32.mrf.mxu0
        %v455 = vadd.f32 0.0, %v454
        %v456 = vpop.f32.mrf.mxu0
        %v457 = vpop.f32.mrf.mxu0
        %v458 = vadd.f32 0.0, %v457
        %v459 = vpop.f32.mrf.mxu0
        %460 = vmatprep.mubr.bf16.mxu0 0
        %461 = vmatmul.mubr.bf16.gmra.mxu0 %v371
        %v462 = vpop.f32.mrf.mxu0
        %v463 = vadd.f32 0.0, %v462
        %v464 = vpop.f32.mrf.mxu0
        %v465 = vpop.f32.mrf.mxu0
        %v466 = vadd.f32 0.0, %v465
        %v467 = vpop.f32.mrf.mxu0
        %468 = vmatprep.mubr.bf16.mxu0 0
        %469 = vmatmul.mubr.bf16.gmra.mxu0 %v374
        %v470 = vpop.f32.mrf.mxu0
        %v471 = vadd.f32 0.0, %v470
        %v472 = vpop.f32.mrf.mxu0
        %v473 = vpop.f32.mrf.mxu0
        %v474 = vadd.f32 0.0, %v473
        %v475 = vpop.f32.mrf.mxu0
        %476 = vmatprep.mubr.bf16.mxu0 0
        %477 = vmatmul.mubr.bf16.gmra.mxu0 %v377
        %v478 = vpop.f32.mrf.mxu0
        %v479 = vadd.f32 0.0, %v478
        %v480 = vpop.f32.mrf.mxu0
        %v481 = vpop.f32.mrf.mxu0
        %v482 = vadd.f32 0.0, %v481
        %v483 = vpop.f32.mrf.mxu0
        %484 = vmatprep.mubr.bf16.mxu0 0
        %485 = vmatmul.mubr.bf16.gmra.mxu0 %v380
        %v486 = vpop.f32.mrf.mxu0
        %v487 = vadd.f32 0.0, %v486
        %v488 = vpop.f32.mrf.mxu0
        %v489 = vpop.f32.mrf.mxu0
        %v490 = vadd.f32 0.0, %v489
        %v491 = vpop.f32.mrf.mxu0
        %492 = vmatprep.mubr.bf16.mxu0 0
        %493 = vmatmul.mubr.bf16.gmra.mxu0 %v383
        %v494 = vpop.f32.mrf.mxu0
        %v495 = vadd.f32 0.0, %v494
        %v496 = vpop.f32.mrf.mxu0
        %v497 = vpop.f32.mrf.mxu0
        %v498 = vadd.f32 0.0, %v497
        %v499 = vpop.f32.mrf.mxu0
        %500 = vmatprep.mubr.bf16.mxu0 0
        %501 = vmatmul.mubr.bf16.gmra.mxu0 %v386
        %v502 = vpop.f32.mrf.mxu0
        %v503 = vadd.f32 0.0, %v502
        %v504 = vpop.f32.mrf.mxu0
        %v505 = vpop.f32.mrf.mxu0
        %v506 = vadd.f32 0.0, %v505
        %v507 = vpop.f32.mrf.mxu0
        %508 = vmatprep.mubr.bf16.mxu0 0
        %509 = vmatmul.mubr.bf16.gmra.mxu0 %v389
        %v510 = vpop.f32.mrf.mxu0
        %v511 = vadd.f32 0.0, %v510
        %v512 = vpop.f32.mrf.mxu0
        %v513 = vpop.f32.mrf.mxu0
        %v514 = vadd.f32 0.0, %v513
        %v515 = vpop.f32.mrf.mxu0
        %516 = vmatprep.mubr.bf16.mxu0 0
        %517 = vmatmul.mubr.bf16.gmra.mxu0 %v392
        %v518 = vpop.f32.mrf.mxu0
        %v519 = vadd.f32 0.0, %v518
        %v520 = vpop.f32.mrf.mxu0
        %v521 = vpop.f32.mrf.mxu0
        %v522 = vadd.f32 0.0, %v521
        %v523 = vpop.f32.mrf.mxu0
        %524 = vmatprep.mubr.bf16.mxu0 0
        %525 = vmatmul.mubr.bf16.gmra.mxu0 %v395
        %v526 = vpop.f32.mrf.mxu0
        %v527 = vadd.f32 0.0, %v526
        %v528 = vpop.f32.mrf.mxu0
        %v529 = vpop.f32.mrf.mxu0
        %v530 = vadd.f32 0.0, %v529
        %v531 = vpop.f32.mrf.mxu0
        %532 = vmatprep.mubr.bf16.mxu0 0
        %533 = vmatmul.mubr.bf16.gmra.mxu0 %v398
        %v534 = vpop.f32.mrf.mxu0
        %v535 = vadd.f32 0.0, %v534
        %v536 = vpop.f32.mrf.mxu0
        %v537 = vpop.f32.mrf.mxu0
        %v538 = vadd.f32 0.0, %v537
        %v539 = vpop.f32.mrf.mxu0
        %540 = vmatprep.mubr.bf16.mxu0 0
        %541 = vmatmul.mubr.bf16.gmra.mxu0 %v401
        %v542 = vpop.f32.mrf.mxu0
        %v543 = vadd.f32 0.0, %v542
        %v544 = vpop.f32.mrf.mxu0
        %v545 = vpop.f32.mrf.mxu0
        %v546 = vadd.f32 0.0, %v545
        %v547 = vpop.f32.mrf.mxu0
        %548 = vmatprep.mubr.bf16.mxu0 0
        %549 = vmatmul.mubr.bf16.gmra.mxu0 %v404
        %v550 = vpop.f32.mrf.mxu0
        %v551 = vadd.f32 0.0, %v550
        %v552 = vpop.f32.mrf.mxu0
        %v553 = vpop.f32.mrf.mxu0
        %v554 = vadd.f32 0.0, %v553
        %v555 = vpop.f32.mrf.mxu0
        %556 = vmatprep.mubr.bf16.mxu0 0
        %557 = vmatmul.mubr.bf16.gmra.mxu0 %v407
        %v558 = vpop.f32.mrf.mxu0
        %v559 = vadd.f32 0.0, %v558
        %v560 = vpop.f32.mrf.mxu0
        %v561 = vpop.f32.mrf.mxu0
        %v562 = vadd.f32 0.0, %v561
        %v563 = vpop.f32.mrf.mxu0
        %564 = vmatprep.mubr.bf16.mxu0 0
        %565 = vmatmul.mubr.bf16.gmra.mxu0 %v410
        %v566 = vpop.f32.mrf.mxu0
        %v567 = vadd.f32 0.0, %v566
        %v568 = vpop.f32.mrf.mxu0
        %v569 = vpop.f32.mrf.mxu0
        %v570 = vadd.f32 0.0, %v569
        %v571 = vpop.f32.mrf.mxu0
        %572 = vdwg.mxu0
        %v575 = vunpack.c.l.b16 %v238
        %v576 = vunpack.c.l.b16 %v239
        %v577 = vpack.c.b16 %v576, %v575
        %v580 = vunpack.c.l.b16 %v270
        %v581 = vunpack.c.l.b16 %v271
        %v582 = vpack.c.b16 %v581, %v580
        %v585 = vsel %vm363, %v577, 0
        %587 = vmatprep.subr.bf16.mxu0 0
        %588 = vmatpush1.bf16.msra.mxu0 0
        %589 = vmatprep.subr.bf16.mxu0 0
        %590 = vmatpush1.bf16.msra.mxu0 0
        %591 = vmatprep.subr.bf16.mxu0 0
        %592 = vmatpush1.bf16.msra.mxu0 0
        %593 = vmatprep.subr.bf16.mxu0 0
        %594 = vmatpush1.bf16.msra.mxu0 0
        %595 = vmatprep.subr.bf16.mxu0 0
        %596 = vmatpush1.bf16.msra.mxu0 0
        %597 = vmatprep.subr.bf16.mxu0 0
        %598 = vmatpush1.bf16.msra.mxu0 0
        %599 = vmatprep.subr.bf16.mxu0 0
        %600 = vmatpush1.bf16.msra.mxu0 0
        %601 = vmatprep.subr.bf16.mxu0 0
        %602 = vmatpush1.bf16.msra.mxu0 %v582
        %603 = vmatprep.subr.bf16.mxu0 0
        %604 = vmatpush2.bf16.msra.mxu0 0
        %605 = vmatprep.subr.bf16.mxu0 0
        %606 = vmatpush2.bf16.msra.mxu0 0
        %607 = vmatprep.subr.bf16.mxu0 0
        %608 = vmatpush2.bf16.msra.mxu0 0
        %609 = vmatprep.subr.bf16.mxu0 0
        %610 = vmatpush2.bf16.msra.mxu0 0
        %611 = vmatprep.subr.bf16.mxu0 0
        %612 = vmatpush2.bf16.msra.mxu0 0
        %613 = vmatprep.subr.bf16.mxu0 0
        %614 = vmatpush2.bf16.msra.mxu0 0
        %615 = vmatprep.subr.bf16.mxu0 0
        %616 = vmatpush2.bf16.msra.mxu0 0
        %617 = vmatprep.subr.bf16.mxu0 0
        %618 = vmatpush2.bf16.msra.mxu0 0
        %619 = vmatprep.mubr.bf16.mxu0 0
        %620 = vmatmul.mubr.bf16.gmra.mxu0 %v585
        %v621 = vpop.f32.mrf.mxu0
        %v622 = vadd.f32 %v447, %v621
        %v623 = vpop.f32.mrf.mxu0
        %v624 = vpop.f32.mrf.mxu0
        %v625 = vadd.f32 %v450, %v624
        %v626 = vpop.f32.mrf.mxu0
        %627 = vmatprep.mubr.bf16.mxu0 0
        %628 = vmatmul.mubr.bf16.gmra.mxu0 %v365
        %v629 = vpop.f32.mrf.mxu0
        %v630 = vadd.f32 %v455, %v629
        %v631 = vpop.f32.mrf.mxu0
        %v632 = vpop.f32.mrf.mxu0
        %v633 = vadd.f32 %v458, %v632
        %v634 = vpop.f32.mrf.mxu0
        %635 = vmatprep.mubr.bf16.mxu0 0
        %636 = vmatmul.mubr.bf16.gmra.mxu0 %v368
        %v637 = vpop.f32.mrf.mxu0
        %v638 = vadd.f32 %v463, %v637
        %v639 = vpop.f32.mrf.mxu0
        %v640 = vpop.f32.mrf.mxu0
        %v641 = vadd.f32 %v466, %v640
        %v642 = vpop.f32.mrf.mxu0
        %643 = vmatprep.mubr.bf16.mxu0 0
        %644 = vmatmul.mubr.bf16.gmra.mxu0 %v371
        %v645 = vpop.f32.mrf.mxu0
        %v646 = vadd.f32 %v471, %v645
        %v647 = vpop.f32.mrf.mxu0
        %v648 = vpop.f32.mrf.mxu0
        %v649 = vadd.f32 %v474, %v648
        %v650 = vpop.f32.mrf.mxu0
        %651 = vmatprep.mubr.bf16.mxu0 0
        %652 = vmatmul.mubr.bf16.gmra.mxu0 %v374
        %v653 = vpop.f32.mrf.mxu0
        %v654 = vadd.f32 %v479, %v653
        %v655 = vpop.f32.mrf.mxu0
        %v656 = vpop.f32.mrf.mxu0
        %v657 = vadd.f32 %v482, %v656
        %v658 = vpop.f32.mrf.mxu0
        %659 = vmatprep.mubr.bf16.mxu0 0
        %660 = vmatmul.mubr.bf16.gmra.mxu0 %v377
        %v661 = vpop.f32.mrf.mxu0
        %v662 = vadd.f32 %v487, %v661
        %v663 = vpop.f32.mrf.mxu0
        %v664 = vpop.f32.mrf.mxu0
        %v665 = vadd.f32 %v490, %v664
        %v666 = vpop.f32.mrf.mxu0
        %667 = vmatprep.mubr.bf16.mxu0 0
        %668 = vmatmul.mubr.bf16.gmra.mxu0 %v380
        %v669 = vpop.f32.mrf.mxu0
        %v670 = vadd.f32 %v495, %v669
        %v671 = vpop.f32.mrf.mxu0
        %v672 = vpop.f32.mrf.mxu0
        %v673 = vadd.f32 %v498, %v672
        %v674 = vpop.f32.mrf.mxu0
        %675 = vmatprep.mubr.bf16.mxu0 0
        %676 = vmatmul.mubr.bf16.gmra.mxu0 %v383
        %v677 = vpop.f32.mrf.mxu0
        %v678 = vadd.f32 %v503, %v677
        %v679 = vpop.f32.mrf.mxu0
        %v680 = vpop.f32.mrf.mxu0
        %v681 = vadd.f32 %v506, %v680
        %v682 = vpop.f32.mrf.mxu0
        %683 = vmatprep.mubr.bf16.mxu0 0
        %684 = vmatmul.mubr.bf16.gmra.mxu0 %v386
        %v685 = vpop.f32.mrf.mxu0
        %v686 = vadd.f32 %v511, %v685
        %v687 = vpop.f32.mrf.mxu0
        %v688 = vpop.f32.mrf.mxu0
        %v689 = vadd.f32 %v514, %v688
        %v690 = vpop.f32.mrf.mxu0
        %691 = vmatprep.mubr.bf16.mxu0 0
        %692 = vmatmul.mubr.bf16.gmra.mxu0 %v389
        %v693 = vpop.f32.mrf.mxu0
        %v694 = vadd.f32 %v519, %v693
        %v695 = vpop.f32.mrf.mxu0
        %v696 = vpop.f32.mrf.mxu0
        %v697 = vadd.f32 %v522, %v696
        %v698 = vpop.f32.mrf.mxu0
        %699 = vmatprep.mubr.bf16.mxu0 0
        %700 = vmatmul.mubr.bf16.gmra.mxu0 %v392
        %v701 = vpop.f32.mrf.mxu0
        %v702 = vadd.f32 %v527, %v701
        %v703 = vpop.f32.mrf.mxu0
        %v704 = vpop.f32.mrf.mxu0
        %v705 = vadd.f32 %v530, %v704
        %v706 = vpop.f32.mrf.mxu0
        %707 = vmatprep.mubr.bf16.mxu0 0
        %708 = vmatmul.mubr.bf16.gmra.mxu0 %v395
        %v709 = vpop.f32.mrf.mxu0
        %v710 = vadd.f32 %v535, %v709
        %v711 = vpop.f32.mrf.mxu0
        %v712 = vpop.f32.mrf.mxu0
        %v713 = vadd.f32 %v538, %v712
        %v714 = vpop.f32.mrf.mxu0
        %715 = vmatprep.mubr.bf16.mxu0 0
        %716 = vmatmul.mubr.bf16.gmra.mxu0 %v398
        %v717 = vpop.f32.mrf.mxu0
        %v718 = vadd.f32 %v543, %v717
        %v719 = vpop.f32.mrf.mxu0
        %v720 = vpop.f32.mrf.mxu0
        %v721 = vadd.f32 %v546, %v720
        %v722 = vpop.f32.mrf.mxu0
        %723 = vmatprep.mubr.bf16.mxu0 0
        %724 = vmatmul.mubr.bf16.gmra.mxu0 %v401
        %v725 = vpop.f32.mrf.mxu0
        %v726 = vadd.f32 %v551, %v725
        %v727 = vpop.f32.mrf.mxu0
        %v728 = vpop.f32.mrf.mxu0
        %v729 = vadd.f32 %v554, %v728
        %v730 = vpop.f32.mrf.mxu0
        %731 = vmatprep.mubr.bf16.mxu0 0
        %732 = vmatmul.mubr.bf16.gmra.mxu0 %v404
        %v733 = vpop.f32.mrf.mxu0
        %v734 = vadd.f32 %v559, %v733
        %v735 = vpop.f32.mrf.mxu0
        %v736 = vpop.f32.mrf.mxu0
        %v737 = vadd.f32 %v562, %v736
        %v738 = vpop.f32.mrf.mxu0
        %739 = vmatprep.mubr.bf16.mxu0 0
        %740 = vmatmul.mubr.bf16.gmra.mxu0 %v407
        %v741 = vpop.f32.mrf.mxu0
        %v742 = vadd.f32 %v567, %v741
        %v743 = vpop.f32.mrf.mxu0
        %v744 = vpop.f32.mrf.mxu0
        %v745 = vadd.f32 %v570, %v744
        %v746 = vpop.f32.mrf.mxu0
        %747 = vdwg.mxu0
        %v748 = vld [vmem:[%s229 + $0x10] sm:$0xf]
        %v749 = vld [vmem:[%s229 + $0x14] sm:$0xf]
        %v750 = vld [vmem:[%s229 + $0x18] sm:$0xf]
        %v751 = vld [vmem:[%s229 + $0x1c] sm:$0xf]
        %v752 = vld [vmem:[%s229 + $0x20] sm:$0xf]
        %v753 = vld [vmem:[%s229 + $0x24] sm:$0xf]
        %v754 = vld [vmem:[%s229 + $0x28] sm:$0xf]
        %v755 = vld [vmem:[%s229 + $0x2c] sm:$0xf]
        %v756 = vld [vmem:[%s229 + $0x30] sm:$0xf]
        %v757 = vld [vmem:[%s229 + $0x34] sm:$0xf]
        %v758 = vld [vmem:[%s229 + $0x38] sm:$0xf]
        %v759 = vld [vmem:[%s229 + $0x3c] sm:$0xf]
        %v760 = vld [vmem:[%s229 + $0x40] sm:$0xf]
        %v761 = vld [vmem:[%s229 + $0x44] sm:$0xf]
        %v762 = vld [vmem:[%s229 + $0x48] sm:$0xf]
        %v763 = vld [vmem:[%s229 + $0x4c] sm:$0xf]
        %v764 = vld [vmem:[%s229 + $0x50] sm:$0xf]
        %v765 = vld [vmem:[%s229 + $0x54] sm:$0xf]
        %v766 = vld [vmem:[%s229 + $0x58] sm:$0xf]
        %v767 = vld [vmem:[%s229 + $0x5c] sm:$0xf]
        %v768 = vld [vmem:[%s229 + $0x60] sm:$0xf]
        %v769 = vld [vmem:[%s229 + $0x64] sm:$0xf]
        %v770 = vld [vmem:[%s229 + $0x68] sm:$0xf]
        %v771 = vld [vmem:[%s229 + $0x6c] sm:$0xf]
        %v772 = vld [vmem:[%s229 + $0x70] sm:$0xf]
        %v773 = vld [vmem:[%s229 + $0x74] sm:$0xf]
        %v774 = vld [vmem:[%s229 + $0x78] sm:$0xf]
        %v775 = vld [vmem:[%s229 + $0x7c] sm:$0xf]
        %v776 = vld [vmem:[%s229 + $0x80] sm:$0xf]
        %v777 = vld [vmem:[%s229 + $0x84] sm:$0xf]
        %v778 = vld [vmem:[%s229 + $0x88] sm:$0xf]
        %v779 = vld [vmem:[%s229 + $0x8c] sm:$0xf]
        %s780 = scalar_lea.vmem %s233, 16
        %v781 = vld [vmem:[%s780] sm:$0xf]
        %v782 = vld [vmem:[%s780 + $0x4] sm:$0xf]
        %v815 = vunpack.c.l.b16 %v748
        %v816 = vunpack.c.l.b16 %v749
        %v817 = vunpack.c.l.b16 %v750
        %v818 = vunpack.c.l.b16 %v751
        %v819 = vunpack.c.l.b16 %v752
        %v820 = vunpack.c.l.b16 %v753
        %v821 = vunpack.c.l.b16 %v754
        %v822 = vunpack.c.l.b16 %v755
        %v823 = vunpack.c.l.b16 %v756
        %v824 = vunpack.c.l.b16 %v757
        %v825 = vunpack.c.l.b16 %v758
        %v826 = vunpack.c.l.b16 %v759
        %v827 = vunpack.c.l.b16 %v760
        %v828 = vunpack.c.l.b16 %v761
        %v829 = vunpack.c.l.b16 %v762
        %v830 = vunpack.c.l.b16 %v763
        %v831 = vunpack.c.l.b16 %v764
        %v832 = vunpack.c.l.b16 %v765
        %v833 = vunpack.c.l.b16 %v766
        %v834 = vunpack.c.l.b16 %v767
        %v835 = vunpack.c.l.b16 %v768
        %v836 = vunpack.c.l.b16 %v769
        %v837 = vunpack.c.l.b16 %v770
        %v838 = vunpack.c.l.b16 %v771
        %v839 = vunpack.c.l.b16 %v772
        %v840 = vunpack.c.l.b16 %v773
        %v841 = vunpack.c.l.b16 %v774
        %v842 = vunpack.c.l.b16 %v775
        %v843 = vunpack.c.l.b16 %v776
        %v844 = vunpack.c.l.b16 %v777
        %v845 = vunpack.c.l.b16 %v778
        %v846 = vunpack.c.l.b16 %v779
        %v847 = vpack.c.b16 %v816, %v815
        %v848 = vpack.c.b16 %v818, %v817
        %v849 = vpack.c.b16 %v820, %v819
        %v850 = vpack.c.b16 %v822, %v821
        %v851 = vpack.c.b16 %v824, %v823
        %v852 = vpack.c.b16 %v826, %v825
        %v853 = vpack.c.b16 %v828, %v827
        %v854 = vpack.c.b16 %v830, %v829
        %v855 = vpack.c.b16 %v832, %v831
        %v856 = vpack.c.b16 %v834, %v833
        %v857 = vpack.c.b16 %v836, %v835
        %v858 = vpack.c.b16 %v838, %v837
        %v859 = vpack.c.b16 %v840, %v839
        %v860 = vpack.c.b16 %v842, %v841
        %v861 = vpack.c.b16 %v844, %v843
        %v862 = vpack.c.b16 %v846, %v845
        %v865 = vunpack.c.l.b16 %v781
        %v866 = vunpack.c.l.b16 %v782
        %v867 = vpack.c.b16 %v866, %v865
        %v870 = vsel %vm363, %v847, 0
        %v873 = vsel %vm363, %v848, 0
        %v876 = vsel %vm363, %v849, 0
        %v879 = vsel %vm363, %v850, 0
        %v882 = vsel %vm363, %v851, 0
        %v885 = vsel %vm363, %v852, 0
        %v888 = vsel %vm363, %v853, 0
        %v891 = vsel %vm363, %v854, 0
        %v894 = vsel %vm363, %v855, 0
        %v897 = vsel %vm363, %v856, 0
        %v900 = vsel %vm363, %v857, 0
        %v903 = vsel %vm363, %v858, 0
        %v906 = vsel %vm363, %v859, 0
        %v909 = vsel %vm363, %v860, 0
        %v912 = vsel %vm363, %v861, 0
        %v915 = vsel %vm363, %v862, 0
        %917 = vmatprep.subr.bf16.mxu0 0
        %918 = vmatpush1.bf16.msra.mxu0 0
        %919 = vmatprep.subr.bf16.mxu0 0
        %920 = vmatpush1.bf16.msra.mxu0 0
        %921 = vmatprep.subr.bf16.mxu0 0
        %922 = vmatpush1.bf16.msra.mxu0 0
        %923 = vmatprep.subr.bf16.mxu0 0
        %924 = vmatpush1.bf16.msra.mxu0 0
        %925 = vmatprep.subr.bf16.mxu0 0
        %926 = vmatpush1.bf16.msra.mxu0 0
        %927 = vmatprep.subr.bf16.mxu0 0
        %928 = vmatpush1.bf16.msra.mxu0 0
        %929 = vmatprep.subr.bf16.mxu0 0
        %930 = vmatpush1.bf16.msra.mxu0 0
        %931 = vmatprep.subr.bf16.mxu0 0
        %932 = vmatpush1.bf16.msra.mxu0 %v867
        %933 = vmatprep.subr.bf16.mxu0 0
        %934 = vmatpush2.bf16.msra.mxu0 0
        %935 = vmatprep.subr.bf16.mxu0 0
        %936 = vmatpush2.bf16.msra.mxu0 0
        %937 = vmatprep.subr.bf16.mxu0 0
        %938 = vmatpush2.bf16.msra.mxu0 0
        %939 = vmatprep.subr.bf16.mxu0 0
        %940 = vmatpush2.bf16.msra.mxu0 0
        %941 = vmatprep.subr.bf16.mxu0 0
        %942 = vmatpush2.bf16.msra.mxu0 0
        %943 = vmatprep.subr.bf16.mxu0 0
        %944 = vmatpush2.bf16.msra.mxu0 0
        %945 = vmatprep.subr.bf16.mxu0 0
        %946 = vmatpush2.bf16.msra.mxu0 0
        %947 = vmatprep.subr.bf16.mxu0 0
        %948 = vmatpush2.bf16.msra.mxu0 0
        %949 = vmatprep.mubr.bf16.mxu0 0
        %950 = vmatmul.mubr.bf16.gmra.mxu0 %v870
        %v951 = vpop.f32.mrf.mxu0
        %v952 = vadd.f32 0.0, %v951
        %v953 = vpop.f32.mrf.mxu0
        %v954 = vpop.f32.mrf.mxu0
        %v955 = vadd.f32 0.0, %v954
        %v956 = vpop.f32.mrf.mxu0
        %957 = vmatprep.mubr.bf16.mxu0 0
        %958 = vmatmul.mubr.bf16.gmra.mxu0 %v873
        %v959 = vpop.f32.mrf.mxu0
        %v960 = vadd.f32 0.0, %v959
        %v961 = vpop.f32.mrf.mxu0
        %v962 = vpop.f32.mrf.mxu0
        %v963 = vadd.f32 0.0, %v962
        %v964 = vpop.f32.mrf.mxu0
        %965 = vmatprep.mubr.bf16.mxu0 0
        %966 = vmatmul.mubr.bf16.gmra.mxu0 %v876
        %v967 = vpop.f32.mrf.mxu0
        %v968 = vadd.f32 0.0, %v967
        %v969 = vpop.f32.mrf.mxu0
        %v970 = vpop.f32.mrf.mxu0
        %v971 = vadd.f32 0.0, %v970
        %v972 = vpop.f32.mrf.mxu0
        %973 = vmatprep.mubr.bf16.mxu0 0
        %974 = vmatmul.mubr.bf16.gmra.mxu0 %v879
        %v975 = vpop.f32.mrf.mxu0
        %v976 = vadd.f32 0.0, %v975
        %v977 = vpop.f32.mrf.mxu0
        %v978 = vpop.f32.mrf.mxu0
        %v979 = vadd.f32 0.0, %v978
        %v980 = vpop.f32.mrf.mxu0
        %981 = vmatprep.mubr.bf16.mxu0 0
        %982 = vmatmul.mubr.bf16.gmra.mxu0 %v882
        %v983 = vpop.f32.mrf.mxu0
        %v984 = vadd.f32 0.0, %v983
        %v985 = vpop.f32.mrf.mxu0
        %v986 = vpop.f32.mrf.mxu0
        %v987 = vadd.f32 0.0, %v986
        %v988 = vpop.f32.mrf.mxu0
        %989 = vmatprep.mubr.bf16.mxu0 0
        %990 = vmatmul.mubr.bf16.gmra.mxu0 %v885
        %v991 = vpop.f32.mrf.mxu0
        %v992 = vadd.f32 0.0, %v991
        %v993 = vpop.f32.mrf.mxu0
        %v994 = vpop.f32.mrf.mxu0
        %v995 = vadd.f32 0.0, %v994
        %v996 = vpop.f32.mrf.mxu0
        %997 = vmatprep.mubr.bf16.mxu0 0
        %998 = vmatmul.mubr.bf16.gmra.mxu0 %v888
        %v999 = vpop.f32.mrf.mxu0
        %v1000 = vadd.f32 0.0, %v999
        %v1001 = vpop.f32.mrf.mxu0
        %v1002 = vpop.f32.mrf.mxu0
        %v1003 = vadd.f32 0.0, %v1002
        %v1004 = vpop.f32.mrf.mxu0
        %1005 = vmatprep.mubr.bf16.mxu0 0
        %1006 = vmatmul.mubr.bf16.gmra.mxu0 %v891
        %v1007 = vpop.f32.mrf.mxu0
        %v1008 = vadd.f32 0.0, %v1007
        %v1009 = vpop.f32.mrf.mxu0
        %v1010 = vpop.f32.mrf.mxu0
        %v1011 = vadd.f32 0.0, %v1010
        %v1012 = vpop.f32.mrf.mxu0
        %1013 = vmatprep.mubr.bf16.mxu0 0
        %1014 = vmatmul.mubr.bf16.gmra.mxu0 %v894
        %v1015 = vpop.f32.mrf.mxu0
        %v1016 = vadd.f32 0.0, %v1015
        %v1017 = vpop.f32.mrf.mxu0
        %v1018 = vpop.f32.mrf.mxu0
        %v1019 = vadd.f32 0.0, %v1018
        %v1020 = vpop.f32.mrf.mxu0
        %1021 = vmatprep.mubr.bf16.mxu0 0
        %1022 = vmatmul.mubr.bf16.gmra.mxu0 %v897
        %v1023 = vpop.f32.mrf.mxu0
        %v1024 = vadd.f32 0.0, %v1023
        %v1025 = vpop.f32.mrf.mxu0
        %v1026 = vpop.f32.mrf.mxu0
        %v1027 = vadd.f32 0.0, %v1026
        %v1028 = vpop.f32.mrf.mxu0
        %1029 = vmatprep.mubr.bf16.mxu0 0
        %1030 = vmatmul.mubr.bf16.gmra.mxu0 %v900
        %v1031 = vpop.f32.mrf.mxu0
        %v1032 = vadd.f32 0.0, %v1031
        %v1033 = vpop.f32.mrf.mxu0
        %v1034 = vpop.f32.mrf.mxu0
        %v1035 = vadd.f32 0.0, %v1034
        %v1036 = vpop.f32.mrf.mxu0
        %1037 = vmatprep.mubr.bf16.mxu0 0
        %1038 = vmatmul.mubr.bf16.gmra.mxu0 %v903
        %v1039 = vpop.f32.mrf.mxu0
        %v1040 = vadd.f32 0.0, %v1039
        %v1041 = vpop.f32.mrf.mxu0
        %v1042 = vpop.f32.mrf.mxu0
        %v1043 = vadd.f32 0.0, %v1042
        %v1044 = vpop.f32.mrf.mxu0
        %1045 = vmatprep.mubr.bf16.mxu0 0
        %1046 = vmatmul.mubr.bf16.gmra.mxu0 %v906
        %v1047 = vpop.f32.mrf.mxu0
        %v1048 = vadd.f32 0.0, %v1047
        %v1049 = vpop.f32.mrf.mxu0
        %v1050 = vpop.f32.mrf.mxu0
        %v1051 = vadd.f32 0.0, %v1050
        %v1052 = vpop.f32.mrf.mxu0
        %1053 = vmatprep.mubr.bf16.mxu0 0
        %1054 = vmatmul.mubr.bf16.gmra.mxu0 %v909
        %v1055 = vpop.f32.mrf.mxu0
        %v1056 = vadd.f32 0.0, %v1055
        %v1057 = vpop.f32.mrf.mxu0
        %v1058 = vpop.f32.mrf.mxu0
        %v1059 = vadd.f32 0.0, %v1058
        %v1060 = vpop.f32.mrf.mxu0
        %1061 = vmatprep.mubr.bf16.mxu0 0
        %1062 = vmatmul.mubr.bf16.gmra.mxu0 %v912
        %v1063 = vpop.f32.mrf.mxu0
        %v1064 = vadd.f32 0.0, %v1063
        %v1065 = vpop.f32.mrf.mxu0
        %v1066 = vpop.f32.mrf.mxu0
        %v1067 = vadd.f32 0.0, %v1066
        %v1068 = vpop.f32.mrf.mxu0
        %1069 = vmatprep.mubr.bf16.mxu0 0
        %1070 = vmatmul.mubr.bf16.gmra.mxu0 %v915
        %v1071 = vpop.f32.mrf.mxu0
        %v1072 = vadd.f32 0.0, %v1071
        %v1073 = vpop.f32.mrf.mxu0
        %v1074 = vpop.f32.mrf.mxu0
        %v1075 = vadd.f32 0.0, %v1074
        %v1076 = vpop.f32.mrf.mxu0
        %1077 = vdwg.mxu0
        %v1078 = vadd.f32 %v622, %v952
        %v1079 = vadd.f32 %v625, %v955
        %v1080 = vadd.f32 %v630, %v960
        %v1081 = vadd.f32 %v633, %v963
        %v1082 = vadd.f32 %v638, %v968
        %v1083 = vadd.f32 %v641, %v971
        %v1084 = vadd.f32 %v646, %v976
        %v1085 = vadd.f32 %v649, %v979
        %v1086 = vadd.f32 %v654, %v984
        %v1087 = vadd.f32 %v657, %v987
        %v1088 = vadd.f32 %v662, %v992
        %v1089 = vadd.f32 %v665, %v995
        %v1090 = vadd.f32 %v670, %v1000
        %v1091 = vadd.f32 %v673, %v1003
        %v1092 = vadd.f32 %v678, %v1008
        %v1093 = vadd.f32 %v681, %v1011
        %v1094 = vadd.f32 %v686, %v1016
        %v1095 = vadd.f32 %v689, %v1019
        %v1096 = vadd.f32 %v694, %v1024
        %v1097 = vadd.f32 %v697, %v1027
        %v1098 = vadd.f32 %v702, %v1032
        %v1099 = vadd.f32 %v705, %v1035
        %v1100 = vadd.f32 %v710, %v1040
        %v1101 = vadd.f32 %v713, %v1043
        %v1102 = vadd.f32 %v718, %v1048
        %v1103 = vadd.f32 %v721, %v1051
        %v1104 = vadd.f32 %v726, %v1056
        %v1105 = vadd.f32 %v729, %v1059
        %v1106 = vadd.f32 %v734, %v1064
        %v1107 = vadd.f32 %v737, %v1067
        %v1108 = vadd.f32 %v742, %v1072
        %v1109 = vadd.f32 %v745, %v1075
        %v1110 = vld [vmem:[%s236] sm:$0x1]
        %v1112 = vlaneseq
        %v1113 = vshrl.u32 %v1112, 7
        %v1114 = vsub.s32 0, %v1113
        %v1115 = vrot.slane %v1110, %v1114
        %v1117 = vadd.f32 %v1078, %v1115
        %v1118 = vadd.f32 %v1079, %v1115
        %v1119 = vadd.f32 %v1080, %v1115
        %v1120 = vadd.f32 %v1081, %v1115
        %v1121 = vadd.f32 %v1082, %v1115
        %v1122 = vadd.f32 %v1083, %v1115
        %v1123 = vadd.f32 %v1084, %v1115
        %v1124 = vadd.f32 %v1085, %v1115
        %v1125 = vadd.f32 %v1086, %v1115
        %v1126 = vadd.f32 %v1087, %v1115
        %v1127 = vadd.f32 %v1088, %v1115
        %v1128 = vadd.f32 %v1089, %v1115
        %v1129 = vadd.f32 %v1090, %v1115
        %v1130 = vadd.f32 %v1091, %v1115
        %v1131 = vadd.f32 %v1092, %v1115
        %v1132 = vadd.f32 %v1093, %v1115
        %v1133 = vadd.f32 %v1094, %v1115
        %v1134 = vadd.f32 %v1095, %v1115
        %v1135 = vadd.f32 %v1096, %v1115
        %v1136 = vadd.f32 %v1097, %v1115
        %v1137 = vadd.f32 %v1098, %v1115
        %v1138 = vadd.f32 %v1099, %v1115
        %v1139 = vadd.f32 %v1100, %v1115
        %v1140 = vadd.f32 %v1101, %v1115
        %v1141 = vadd.f32 %v1102, %v1115
        %v1142 = vadd.f32 %v1103, %v1115
        %v1143 = vadd.f32 %v1104, %v1115
        %v1144 = vadd.f32 %v1105, %v1115
        %v1145 = vadd.f32 %v1106, %v1115
        %v1146 = vadd.f32 %v1107, %v1115
        %v1147 = vadd.f32 %v1108, %v1115
        %v1148 = vadd.f32 %v1109, %v1115
        %v1149 = vpack.c.bf16 %v1118, %v1117
        %v1150 = vpack.c.bf16 %v1120, %v1119
        %v1151 = vpack.c.bf16 %v1122, %v1121
        %v1152 = vpack.c.bf16 %v1124, %v1123
        %v1153 = vpack.c.bf16 %v1126, %v1125
        %v1154 = vpack.c.bf16 %v1128, %v1127
        %v1155 = vpack.c.bf16 %v1130, %v1129
        %v1156 = vpack.c.bf16 %v1132, %v1131
        %v1157 = vpack.c.bf16 %v1134, %v1133
        %v1158 = vpack.c.bf16 %v1136, %v1135
        %v1159 = vpack.c.bf16 %v1138, %v1137
        %v1160 = vpack.c.bf16 %v1140, %v1139
        %v1161 = vpack.c.bf16 %v1142, %v1141
        %v1162 = vpack.c.bf16 %v1144, %v1143
        %v1163 = vpack.c.bf16 %v1146, %v1145
        %v1164 = vpack.c.bf16 %v1148, %v1147
        %v1181 = vunpack.c.l.b16 %v1149
        %v1182 = vunpack.c.h.b16 %v1149
        %v1183 = vunpack.c.l.b16 %v1150
        %v1184 = vunpack.c.h.b16 %v1150
        %v1185 = vunpack.c.l.b16 %v1151
        %v1186 = vunpack.c.h.b16 %v1151
        %v1187 = vunpack.c.l.b16 %v1152
        %v1188 = vunpack.c.h.b16 %v1152
        %v1189 = vunpack.c.l.b16 %v1153
        %v1190 = vunpack.c.h.b16 %v1153
        %v1191 = vunpack.c.l.b16 %v1154
        %v1192 = vunpack.c.h.b16 %v1154
        %v1193 = vunpack.c.l.b16 %v1155
        %v1194 = vunpack.c.h.b16 %v1155
        %v1195 = vunpack.c.l.b16 %v1156
        %v1196 = vunpack.c.h.b16 %v1156
        %v1197 = vunpack.c.l.b16 %v1157
        %v1198 = vunpack.c.h.b16 %v1157
        %v1199 = vunpack.c.l.b16 %v1158
        %v1200 = vunpack.c.h.b16 %v1158
        %v1201 = vunpack.c.l.b16 %v1159
        %v1202 = vunpack.c.h.b16 %v1159
        %v1203 = vunpack.c.l.b16 %v1160
        %v1204 = vunpack.c.h.b16 %v1160
        %v1205 = vunpack.c.l.b16 %v1161
        %v1206 = vunpack.c.h.b16 %v1161
        %v1207 = vunpack.c.l.b16 %v1162
        %v1208 = vunpack.c.h.b16 %v1162
        %v1209 = vunpack.c.l.b16 %v1163
        %v1210 = vunpack.c.h.b16 %v1163
        %v1211 = vunpack.c.l.b16 %v1164
        %v1212 = vunpack.c.h.b16 %v1164
        %v1213 = vpack.c.b16 %v1181, %v1181
        %v1214 = vpack.c.b16 %v1182, %v1182
        %v1215 = vpack.c.b16 %v1183, %v1183
        %v1216 = vpack.c.b16 %v1184, %v1184
        %v1217 = vpack.c.b16 %v1185, %v1185
        %v1218 = vpack.c.b16 %v1186, %v1186
        %v1219 = vpack.c.b16 %v1187, %v1187
        %v1220 = vpack.c.b16 %v1188, %v1188
        %v1221 = vpack.c.b16 %v1189, %v1189
        %v1222 = vpack.c.b16 %v1190, %v1190
        %v1223 = vpack.c.b16 %v1191, %v1191
        %v1224 = vpack.c.b16 %v1192, %v1192
        %v1225 = vpack.c.b16 %v1193, %v1193
        %v1226 = vpack.c.b16 %v1194, %v1194
        %v1227 = vpack.c.b16 %v1195, %v1195
        %v1228 = vpack.c.b16 %v1196, %v1196
        %v1229 = vpack.c.b16 %v1197, %v1197
        %v1230 = vpack.c.b16 %v1198, %v1198
        %v1231 = vpack.c.b16 %v1199, %v1199
        %v1232 = vpack.c.b16 %v1200, %v1200
        %v1233 = vpack.c.b16 %v1201, %v1201
        %v1234 = vpack.c.b16 %v1202, %v1202
        %v1235 = vpack.c.b16 %v1203, %v1203
        %v1236 = vpack.c.b16 %v1204, %v1204
        %v1237 = vpack.c.b16 %v1205, %v1205
        %v1238 = vpack.c.b16 %v1206, %v1206
        %v1239 = vpack.c.b16 %v1207, %v1207
        %v1240 = vpack.c.b16 %v1208, %v1208
        %v1241 = vpack.c.b16 %v1209, %v1209
        %v1242 = vpack.c.b16 %v1210, %v1210
        %v1243 = vpack.c.b16 %v1211, %v1211
        %v1244 = vpack.c.b16 %v1212, %v1212
        %1277 = vst [vmem:[%s220] sm:$0xf] %v1213
        %1278 = vst [vmem:[%s220 + $0x4] sm:$0xf] %v1214
        %1279 = vst [vmem:[%s220 + $0x8] sm:$0xf] %v1215
        %1280 = vst [vmem:[%s220 + $0xc] sm:$0xf] %v1216
        %1281 = vst [vmem:[%s220 + $0x10] sm:$0xf] %v1217
        %1282 = vst [vmem:[%s220 + $0x14] sm:$0xf] %v1218
        %1283 = vst [vmem:[%s220 + $0x18] sm:$0xf] %v1219
        %1284 = vst [vmem:[%s220 + $0x1c] sm:$0xf] %v1220
        %1285 = vst [vmem:[%s220 + $0x20] sm:$0xf] %v1221
        %1286 = vst [vmem:[%s220 + $0x24] sm:$0xf] %v1222
        %1287 = vst [vmem:[%s220 + $0x28] sm:$0xf] %v1223
        %1288 = vst [vmem:[%s220 + $0x2c] sm:$0xf] %v1224
        %1289 = vst [vmem:[%s220 + $0x30] sm:$0xf] %v1225
        %1290 = vst [vmem:[%s220 + $0x34] sm:$0xf] %v1226
        %1291 = vst [vmem:[%s220 + $0x38] sm:$0xf] %v1227
        %1292 = vst [vmem:[%s220 + $0x3c] sm:$0xf] %v1228
        %1293 = vst [vmem:[%s220 + $0x40] sm:$0xf] %v1229
        %1294 = vst [vmem:[%s220 + $0x44] sm:$0xf] %v1230
        %1295 = vst [vmem:[%s220 + $0x48] sm:$0xf] %v1231
        %1296 = vst [vmem:[%s220 + $0x4c] sm:$0xf] %v1232
        %1297 = vst [vmem:[%s220 + $0x50] sm:$0xf] %v1233
        %1298 = vst [vmem:[%s220 + $0x54] sm:$0xf] %v1234
        %1299 = vst [vmem:[%s220 + $0x58] sm:$0xf] %v1235
        %1300 = vst [vmem:[%s220 + $0x5c] sm:$0xf] %v1236
        %1301 = vst [vmem:[%s220 + $0x60] sm:$0xf] %v1237
        %1302 = vst [vmem:[%s220 + $0x64] sm:$0xf] %v1238
        %1303 = vst [vmem:[%s220 + $0x68] sm:$0xf] %v1239
        %1304 = vst [vmem:[%s220 + $0x6c] sm:$0xf] %v1240
        %1305 = vst [vmem:[%s220 + $0x70] sm:$0xf] %v1241
        %1306 = vst [vmem:[%s220 + $0x74] sm:$0xf] %v1242
        %1307 = vst [vmem:[%s220 + $0x78] sm:$0xf] %v1243
        %1308 = vst [vmem:[%s220 + $0x7c] sm:$0xf] %v1244
        %s1309 = sand.u32 %s128, 1
        %s1310 = scalar_lea.sflag [#allocation3], %s1309
        %s1311 = sand.u32 %s128, 1
        %s1312 = smul.addr %s1311, 128
        %s1313 = scalar_lea.vmem [#allocation2], %s1312
        // Predicated region
        $region33: #{tpu_custom_call.1} parent=31 // pred_check
          %p1314 = pneg %p138
        $region34: #{tpu_custom_call.1} parent=31 // pred_check_branch
          %1316 = sbr.rel (%p1314) target = $region36
        $region35: #{tpu_custom_call.1} parent=31 // pred_region
          %s1318 = ssub.s32 2048, 2048
          %1319 = vsyncadd %s1310, %s1318
          %s1320 = smul.addr %s23, 32
          %s1321 = sadd.s32 %s24, %s1320
          %s1322 = smul.addr %s22, 32
          %s1323 = sadd.s32 %s1321, %s1322
          %s1324 = smul.addr %s1323, 64
          %s1325 = scalar_lea.hbm %s3, %s1324
          %s1326 = sshll.u32 %s1313, 4
          %s1327 = int_to_ptr.vmem [resolvable:$true] %s1326
          %1332 = dma.vmem_to_hbm [thread:$0]  %s1327, 2048, %s1325, %s1310, 64, 64, 4
        $region36: #{tpu_custom_call.1} parent=31 // pred_fallthru
          _
      $region32: #{tpu_custom_call.1} parent=5 // pred_fallthru
        _
      %p1333 = scmp.le.s32.totalorder 2, %s12
      // Predicated region
      $region37: #{tpu_custom_call.1} parent=5 // pred_check
        %p1334 = pneg %p1333
      $region38: #{tpu_custom_call.1} parent=5 // pred_check_branch
        %1336 = sbr.rel (%p1334) target = $region40
      $region39: #{tpu_custom_call.1} parent=5 // pred_region
        %s1337 = ssub.s32 %s12, 2
        // Predicated region
        $region41: #{tpu_custom_call.1} parent=39 // pred_check
          %p1338 = pneg %p144
        $region42: #{tpu_custom_call.1} parent=39 // pred_check_branch
          %1340 = sbr.rel (%p1338) target = $region44
        $region43: #{tpu_custom_call.1} parent=39 // pred_region
          %s1341 = sand.u32 %s129, 1
          %s1342 = scalar_lea.sflag [#allocation3], %s1341
          %s1343 = sand.u32 %s129, 1
          %s1344 = smul.addr %s1343, 128
          %s1345 = scalar_lea.vmem [#allocation2], %s1344
          %1346 = dma.done %s1342, 2048
        $region44: #{tpu_custom_call.1} parent=39 // pred_fallthru
          _
      $region40: #{tpu_custom_call.1} parent=5 // pred_fallthru
        _
    $region6: #{tpu_custom_call.1} parent=1 // loop_footer
      %s16 = sadd.s32 1, %s12
    $region7: #{tpu_custom_call.1} parent=1 // loop_footer_branch
      %11 = sbr.rel target = $region3
    $region8: #{tpu_custom_call.1} parent=1 // loop_exit
      _
    %1347 = vsyncpa [#allocation3], 1
    %s1348 = scalar_lea.sflag [#allocation3], 1
    %1349 = vsyncpa %s1348, 1

</llo_original>
